<compile_context>
chip_gen: v7x
topology: tpu7x:2x2x1
jax: 0.10.0
libtpu: 0.0.40
codegen_flags: <defaults>
</compile_context>

<pallas_src>
import functools

import jax
import jax.numpy as jnp
from jax.experimental import pallas as pl
from jax.experimental.pallas import tpu as pltpu

_SMOOTH = 1.0


def _accumulate_sums(out_ref, intersection, pred_sum, tgt_sum):
    """Accumulate the three dice partial sums into lanes 0/1/2 of out_ref."""
    lane = jax.lax.broadcasted_iota(
        jnp.int32, out_ref.shape, len(out_ref.shape) - 1
    )
    out_ref[...] += (
        jnp.where(lane == 0, intersection, 0.0)
        + jnp.where(lane == 1, pred_sum, 0.0)
        + jnp.where(lane == 2, tgt_sum, 0.0)
    ).astype(out_ref.dtype)


def _dice_softmax_kernel(x_ref, t_ref, out_ref, *, hw):
    # x_ref: (1, C, TILE) logits, t_ref: (1, 1, TILE) target (native dtype),
    # out_ref: (1, 1, 128) f32 partial sums for this batch element.
    m_idx = pl.program_id(1)

    @pl.when(m_idx == 0)
    def _():
        out_ref[...] = jnp.zeros_like(out_ref)

    x = x_ref[...].astype(jnp.float32)          # (1, C, TILE)
    t = t_ref[...].astype(jnp.float32)          # (1, 1, TILE)
    tile = x.shape[-1]

    # Numerically-stable softmax over the channel axis; pred = P(class 1).
    mx = jnp.max(x, axis=1, keepdims=True)      # (1, 1, TILE)
    e = jnp.exp(x - mx)                         # (1, C, TILE)
    denom = jnp.sum(e, axis=1, keepdims=True)   # (1, 1, TILE)
    # approx reciprocal runs on the otherwise-idle EUP slot.
    pred = e[:, 1:2, :] * pl.reciprocal(denom, approx=True)

    # Mask the padded remainder of the last M tile (garbage lanes).
    lane = jax.lax.broadcasted_iota(jnp.int32, (1, 1, tile), 2)
    valid = (m_idx * tile + lane) < hw
    pred = jnp.where(valid, pred, 0.0)
    t = jnp.where(valid, t, 0.0)

    _accumulate_sums(out_ref, jnp.sum(pred * t), jnp.sum(pred), jnp.sum(t))


def _dice_sigmoid_kernel(x_ref, t_ref, out_ref, *, m_true):
    # x_ref/t_ref: (TILE_R, 128); out_ref: (1, 128) f32 partial sums.
    step = pl.program_id(0)

    @pl.when(step == 0)
    def _():
        out_ref[...] = jnp.zeros_like(out_ref)

    x = x_ref[...].astype(jnp.float32)
    t = t_ref[...].astype(jnp.float32)
    tile_r = x.shape[0]

    row = jax.lax.broadcasted_iota(jnp.int32, x.shape, 0)
    lane = jax.lax.broadcasted_iota(jnp.int32, x.shape, 1)
    flat = (step * tile_r + row) * 128 + lane
    valid = flat < m_true

    pred = jnp.where(valid, jax.nn.sigmoid(x), 0.0)
    t = jnp.where(valid, t, 0.0)

    _accumulate_sums(out_ref, jnp.sum(pred * t), jnp.sum(pred), jnp.sum(t))


def dice_loss(output, target, *, tile_lanes=None, tile_rows=None):
    """Pallas implementation of DiceLoss.forward.

    output: (N, C, H, W) logits -> softmax branch (pred = P(class 1)),
            or (M,) logits      -> sigmoid branch.
    target: anything that flattens to N*H*W (resp. M) elements, any dtype
            (kept narrow in HBM, cast to f32 inside the kernel).
    tile_lanes / tile_rows: optional tile-size overrides (used by the tests).
    """
    if output.ndim > 1:
        N, C, H, W = output.shape
        assert C >= 2, "softmax branch uses class-1 probability; needs C >= 2"
        HW = H * W
        x = output.reshape(N, C, HW)            # free view of NCHW (no copy)
        t = target.reshape(N, 1, HW)            # native dtype, cast in kernel

        # ~2 MiB of f32 logits per buffered block: comfortably inside the
        # default scoped VMEM on v5e/v6e and v7x's smaller 64 MiB VMEM.
        tile_max = max(128, ((2 * 1024 * 1024) // (4 * C)) // 128 * 128)
        if tile_lanes is not None:
            tile_max = tile_lanes
        tile = HW if HW <= tile_max else tile_max
        n_m = pl.cdiv(HW, tile)

        partials = pl.pallas_call(
            functools.partial(_dice_softmax_kernel, hw=HW),
            out_shape=jax.ShapeDtypeStruct((N, 1, 128), jnp.float32),
            grid=(N, n_m),
            in_specs=[
                pl.BlockSpec((1, C, tile), lambda n, m: (n, 0, m)),
                pl.BlockSpec((1, 1, tile), lambda n, m: (n, 0, m)),
            ],
            out_specs=pl.BlockSpec((1, 1, 128), lambda n, m: (n, 0, 0)),
            compiler_params=pltpu.CompilerParams(
                dimension_semantics=("parallel", "arbitrary"),
                vmem_limit_bytes=32 * 1024 * 1024,
            ),
        )(x, t)
        sums = jnp.sum(partials.reshape(N, 128)[:, :3], axis=0)
    else:
        x_flat = output.reshape(-1)
        t_flat = target.reshape(-1)
        M = x_flat.shape[0]
        m_pad = ((M + 127) // 128) * 128
        if m_pad != M:                          # tiny pad to a lane multiple
            x_flat = jnp.pad(x_flat, (0, m_pad - M))
            t_flat = jnp.pad(t_flat, (0, m_pad - M))
        R = m_pad // 128
        x2 = x_flat.reshape(R, 128)             # full 8-sublane vreg usage
        t2 = t_flat.reshape(R, 128)

        tile_r_max = 4096                       # 4096*128*4B = 2 MiB f32 block
        if tile_rows is not None:
            tile_r_max = tile_rows
        tile_r = R if R <= tile_r_max else tile_r_max
        n_r = pl.cdiv(R, tile_r)

        partials = pl.pallas_call(
            functools.partial(_dice_sigmoid_kernel, m_true=M),
            out_shape=jax.ShapeDtypeStruct((1, 128), jnp.float32),
            grid=(n_r,),
            in_specs=[
                pl.BlockSpec((tile_r, 128), lambda i: (i, 0)),
                pl.BlockSpec((tile_r, 128), lambda i: (i, 0)),
            ],
            out_specs=pl.BlockSpec((1, 128), lambda i: (0, 0)),
            compiler_params=pltpu.CompilerParams(
                dimension_semantics=("arbitrary",),
                vmem_limit_bytes=32 * 1024 * 1024,
            ),
        )(x2, t2)
        sums = partials[0, :3]

    intersection, pred_sum, tgt_sum = sums[0], sums[1], sums[2]
    smooth = jnp.float32(_SMOOTH)
    return 1.0 - (2.0 * intersection + smooth) / (pred_sum + tgt_sum + smooth)


def _dice_loss_ref(output, target):
    # Pure-JAX reference mirroring the PyTorch module.
    target = target.astype(jnp.float32).reshape(-1)
    if output.ndim > 1:
        o = jnp.transpose(output, (0, 2, 3, 1)).astype(jnp.float32)
        o = jax.nn.softmax(o, axis=-1)
        pred = o[..., 1].reshape(-1)
    else:
        pred = jax.nn.sigmoid(output.astype(jnp.float32).reshape(-1))
    smooth = 1.0
    inter = jnp.sum(pred * target)
    return 1.0 - (2.0 * inter + smooth) / (
        jnp.sum(pred) + jnp.sum(target) + smooth
    )


if __name__ == "__main__":
    key = jax.random.PRNGKey(0)
    k1, k2, k3, k4, k5, k6 = jax.random.split(key, 6)

    # --- 4-D (softmax) branch, single M tile: N=2, C=4, H=W=16 ---
    N, C, H, W = 2, 4, 16, 16
    logits = jax.random.normal(k1, (N, C, H, W), dtype=jnp.float32)
    target = (jax.random.uniform(k2, (N, H, W)) > 0.5).astype(jnp.int8)

    loss = jax.block_until_ready(dice_loss(logits, target))
    ref = jax.block_until_ready(_dice_loss_ref(logits, target))
    # approx reciprocal in the softmax denominator -> ~1e-4-level scalar error
    assert jnp.allclose(loss, ref, atol=1e-3, rtol=1e-3), (loss, ref)

    # --- 4-D branch, multi-tile reduction + remainder masking (HW=320, T=128) ---
    N2, C2, H2, W2 = 2, 4, 16, 20
    logits2 = jax.random.normal(k3, (N2, C2, H2, W2), dtype=jnp.float32)
    target2 = (jax.random.uniform(k4, (N2, H2, W2)) > 0.5).astype(jnp.int8)

    loss2 = jax.block_until_ready(dice_loss(logits2, target2, tile_lanes=128))
    ref2 = jax.block_until_ready(_dice_loss_ref(logits2, target2))
    assert jnp.allclose(loss2, ref2, atol=1e-3, rtol=1e-3), (loss2, ref2)

    # --- 1-D (sigmoid) branch: M=2500 (pad + multi-tile + masking) ---
    M = 2500
    logits1d = jax.random.normal(k5, (M,), dtype=jnp.float32)
    target1d = (jax.random.uniform(k6, (M,)) > 0.5).astype(jnp.int8)

    loss1d = jax.block_until_ready(dice_loss(logits1d, target1d, tile_rows=8))
    ref1d = jax.block_until_ready(_dice_loss_ref(logits1d, target1d))
    assert jnp.allclose(loss1d, ref1d, atol=1e-4, rtol=1e-4), (loss1d, ref1d)

    print("KERNEL_OK")
</pallas_src>

<mosaic_0001>
module attributes {stable_mosaic.version = 11 : i64} {
  func.func @_dice_softmax_kernel(%arg0: i32, %arg1: i32, %arg2: memref<1x4x256xf32, #tpu.memory_space<vmem>>, %arg3: memref<1x1x256xi8, #tpu.memory_space<vmem>>, %arg4: memref<1x1x128xf32, #tpu.memory_space<vmem>>) attributes {dimension_semantics = [#tpu.dimension_semantics<parallel>, #tpu.dimension_semantics<arbitrary>], iteration_bounds = array<i64: 2, 1>, scalar_prefetch = 0 : i64, scratch_operands = 0 : i64, tpu.core_type = #tpu.core_type<tc>, window_params = [{transform_indices = @transform_0, window_bounds = array<i64: 1, 4, 256>}, {transform_indices = @transform_1, window_bounds = array<i64: 1, 1, 256>}, {transform_indices = @transform_2, window_bounds = array<i64: 1, 1, 128>}]} {
    %c0_i32 = arith.constant 0 : i32
    %0 = arith.cmpi eq, %arg1, %c0_i32 : i32
    %1 = arith.extui %0 : i1 to i32
    %c0_i32_0 = arith.constant 0 : i32
    %2 = arith.cmpi ne, %1, %c0_i32_0 : i32
    scf.if %2 {
      %cst_23 = arith.constant 0.000000e+00 : f32
      %60 = vector.broadcast %cst_23 : f32 to vector<1x1x128xf32>
      %c0_24 = arith.constant 0 : index
      %c0_25 = arith.constant 0 : index
      %c0_26 = arith.constant 0 : index
      %61 = vector.load %arg4[%c0_24, %c0_25, %c0_26] : memref<1x1x128xf32, #tpu.memory_space<vmem>>, vector<1x1x128xf32>
      tpu.vector_store %arg4[%c0_24, %c0_25, %c0_26], %60 {strides = array<i32>} : memref<1x1x128xf32, #tpu.memory_space<vmem>>, vector<1x1x128xf32>,
    } else {
    }
    %c0 = arith.constant 0 : index
    %c0_1 = arith.constant 0 : index
    %c0_2 = arith.constant 0 : index
    %3 = vector.load %arg2[%c0, %c0_1, %c0_2] : memref<1x4x256xf32, #tpu.memory_space<vmem>>, vector<1x4x256xf32>
    %c0_3 = arith.constant 0 : index
    %c0_4 = arith.constant 0 : index
    %c0_5 = arith.constant 0 : index
    %4 = vector.load %arg3[%c0_3, %c0_4, %c0_5] : memref<1x1x256xi8, #tpu.memory_space<vmem>>, vector<1x1x256xi8>
    %5 = arith.sitofp %4 : vector<1x1x256xi8> to vector<1x1x256xf32>
    %cst = arith.constant dense<0xFF800000> : vector<1x256xf32>
    %6 = vector.multi_reduction <maximumf>, %3, %cst [1] : vector<1x4x256xf32> to vector<1x256xf32>
    %7 = vector.shape_cast %6 : vector<1x256xf32> to vector<1x1x256xf32>
    %8 = vector.broadcast %7 : vector<1x1x256xf32> to vector<1x4x256xf32>
    %9 = arith.subf %3, %8 : vector<1x4x256xf32>
    %10 = math.exp %9 : vector<1x4x256xf32>
    %cst_6 = arith.constant dense<0.000000e+00> : vector<1x256xf32>
    %11 = vector.multi_reduction <add>, %10, %cst_6 [1] : vector<1x4x256xf32> to vector<1x256xf32>
    %12 = vector.shape_cast %11 : vector<1x256xf32> to vector<1x1x256xf32>
    %13 = vector.extract_strided_slice %10 {offsets = [0, 1, 0], sizes = [1, 1, 256], strides = [1, 1, 1]} : vector<1x4x256xf32> to vector<1x1x256xf32>
    %14 = tpu.reciprocal %12 {approx = true} : vector<1x1x256xf32> -> vector<1x1x256xf32>
    %15 = arith.mulf %13, %14 : vector<1x1x256xf32>
    %16 = tpu.iota {dimensions = array<i32: 2>} : vector<1x1x256xi32>
    %c256_i32 = arith.constant 256 : i32
    %17 = arith.muli %arg1, %c256_i32 : i32
    %18 = vector.broadcast %17 : i32 to vector<1x1x256xi32>
    %19 = arith.addi %18, %16 : vector<1x1x256xi32>
    %c256_i32_7 = arith.constant 256 : i32
    %20 = vector.broadcast %c256_i32_7 : i32 to vector<1x1x256xi32>
    %21 = arith.cmpi slt, %19, %20 : vector<1x1x256xi32>
    %cst_8 = arith.constant 0.000000e+00 : f32
    %22 = vector.broadcast %cst_8 : f32 to vector<1x1x256xf32>
    %23 = arith.select %21, %15, %22 : vector<1x1x256xi1>, vector<1x1x256xf32>
    %cst_9 = arith.constant 0.000000e+00 : f32
    %24 = vector.broadcast %cst_9 : f32 to vector<1x1x256xf32>
    %25 = arith.select %21, %5, %24 : vector<1x1x256xi1>, vector<1x1x256xf32>
    %26 = arith.mulf %23, %25 : vector<1x1x256xf32>
    %27 = vector.shape_cast %26 : vector<1x1x256xf32> to vector<1x1x1x256xf32>
    %cst_10 = arith.constant dense<0.000000e+00> : vector<1xf32>
    %28 = vector.multi_reduction <add>, %27, %cst_10 [1, 2, 3] : vector<1x1x1x256xf32> to vector<1xf32>
    %29 = vector.shape_cast %28 : vector<1xf32> to vector<1x1x1x1xf32>
    %30 = vector.extract %29[0, 0, 0, 0] : f32 from vector<1x1x1x1xf32>
    %31 = vector.shape_cast %23 : vector<1x1x256xf32> to vector<1x1x1x256xf32>
    %cst_11 = arith.constant dense<0.000000e+00> : vector<1xf32>
    %32 = vector.multi_reduction <add>, %31, %cst_11 [1, 2, 3] : vector<1x1x1x256xf32> to vector<1xf32>
    %33 = vector.shape_cast %32 : vector<1xf32> to vector<1x1x1x1xf32>
    %34 = vector.extract %33[0, 0, 0, 0] : f32 from vector<1x1x1x1xf32>
    %35 = vector.shape_cast %25 : vector<1x1x256xf32> to vector<1x1x1x256xf32>
    %cst_12 = arith.constant dense<0.000000e+00> : vector<1xf32>
    %36 = vector.multi_reduction <add>, %35, %cst_12 [1, 2, 3] : vector<1x1x1x256xf32> to vector<1xf32>
    %37 = vector.shape_cast %36 : vector<1xf32> to vector<1x1x1x1xf32>
    %38 = vector.extract %37[0, 0, 0, 0] : f32 from vector<1x1x1x1xf32>
    %39 = tpu.iota {dimensions = array<i32: 2>} : vector<1x1x128xi32>
    %c0_13 = arith.constant 0 : index
    %c0_14 = arith.constant 0 : index
    %c0_15 = arith.constant 0 : index
    %40 = vector.load %arg4[%c0_13, %c0_14, %c0_15] : memref<1x1x128xf32, #tpu.memory_space<vmem>>, vector<1x1x128xf32>
    %c0_i32_16 = arith.constant 0 : i32
    %41 = vector.broadcast %c0_i32_16 : i32 to vector<1x1x128xi32>
    %42 = arith.cmpi eq, %39, %41 : vector<1x1x128xi32>
    %cst_17 = arith.constant 0.000000e+00 : f32
    %43 = vector.broadcast %30 : f32 to vector<1x1x128xf32>
    %44 = vector.broadcast %cst_17 : f32 to vector<1x1x128xf32>
    %45 = arith.select %42, %43, %44 : vector<1x1x128xi1>, vector<1x1x128xf32>
    %c1_i32 = arith.constant 1 : i32
    %46 = vector.broadcast %c1_i32 : i32 to vector<1x1x128xi32>
    %47 = arith.cmpi eq, %39, %46 : vector<1x1x128xi32>
    %cst_18 = arith.constant 0.000000e+00 : f32
    %48 = vector.broadcast %34 : f32 to vector<1x1x128xf32>
    %49 = vector.broadcast %cst_18 : f32 to vector<1x1x128xf32>
    %50 = arith.select %47, %48, %49 : vector<1x1x128xi1>, vector<1x1x128xf32>
    %51 = arith.addf %45, %50 : vector<1x1x128xf32>
    %c2_i32 = arith.constant 2 : i32
    %52 = vector.broadcast %c2_i32 : i32 to vector<1x1x128xi32>
    %53 = arith.cmpi eq, %39, %52 : vector<1x1x128xi32>
    %cst_19 = arith.constant 0.000000e+00 : f32
    %54 = vector.broadcast %38 : f32 to vector<1x1x128xf32>
    %55 = vector.broadcast %cst_19 : f32 to vector<1x1x128xf32>
    %56 = arith.select %53, %54, %55 : vector<1x1x128xi1>, vector<1x1x128xf32>
    %57 = arith.addf %51, %56 : vector<1x1x128xf32>
    %58 = arith.addf %40, %57 : vector<1x1x128xf32>
    %c0_20 = arith.constant 0 : index
    %c0_21 = arith.constant 0 : index
    %c0_22 = arith.constant 0 : index
    %59 = vector.load %arg4[%c0_20, %c0_21, %c0_22] : memref<1x1x128xf32, #tpu.memory_space<vmem>>, vector<1x1x128xf32>
    tpu.vector_store %arg4[%c0_20, %c0_21, %c0_22], %58 {strides = array<i32>} : memref<1x1x128xf32, #tpu.memory_space<vmem>>, vector<1x1x128xf32>,
    return
  }
  func.func @transform_0(%arg0: i32, %arg1: i32) -> (i32, i32, i32) {
    %c0_i32 = arith.constant 0 : i32
    %c0_i32_0 = arith.constant 0 : i32
    return %arg0, %c0_i32, %arg1 : i32, i32, i32
  }
  func.func @transform_1(%arg0: i32, %arg1: i32) -> (i32, i32, i32) {
    %c0_i32 = arith.constant 0 : i32
    %c0_i32_0 = arith.constant 0 : i32
    return %arg0, %c0_i32, %arg1 : i32, i32, i32
  }
  func.func @transform_2(%arg0: i32, %arg1: i32) -> (i32, i32, i32) {
    %c0_i32 = arith.constant 0 : i32
    %c0_i32_0 = arith.constant 0 : i32
    %c0_i32_1 = arith.constant 0 : i32
    return %arg0, %c0_i32, %c0_i32_0 : i32, i32, i32
  }
}

</mosaic_0001>

<llo_original>
// kernel: tpu_custom_call.1
$region0: #{tpu_custom_call.1}
  #allocation0 [shape = 'u32[]', space=smem, size = 0x4, offset = 0x4, fixed_abs, tag = 'smem constant byte address 0x4 - core index']
  #allocation1 [shape = 'u32[144,128]{1,0:T(1,128)}', space=vmem, size = 0x12000, scoped, tag = 'internal scratch']
  %s0 = inlined_call_operand.hbm [shape: f32[2,4,256], index: 0, kind: input, shape index: {}]
  %s1 = inlined_call_operand.vmem [shape: s8[2,1,256], index: 1, kind: input, shape index: {}]
  %s2 = inlined_call_operand.hbm [shape: f32[2,1,128], index: 2, kind: output, shape index: {}]
  %s3 = sld [smem:[#allocation0]]
  $region49: #{tpu_custom_call.1} parent=0
    _
  %s5 = ssub.s32 1, %s3
  %s6 = scalar_select 0, %s5, %s3
  $region1: #{tpu_custom_call.1} parent=0
    #allocation2 [shape = 'u8[8192]{0}', space=vmem, size = 0x2000, scoped, tag = 'input window, operand 0']
    #allocation3 [shape = 's32[2]{0}', space=sflag, size = 0x8, scoped, tag = 'scoped memory for tpu_custom_call.1']
    #allocation4 [shape = 's32[2]{0}', space=sflag, size = 0x8, scoped, tag = 'scoped memory for tpu_custom_call.1']
    #allocation5 [shape = 'u8[1024]{0}', space=vmem, size = 0x400, scoped, tag = 'output window, operand 0']
    %7 = vsyncpa [#allocation3], 0
    %s8 = scalar_lea.sflag [#allocation3], 1
    %9 = vsyncpa %s8, 0
    %10 = vsyncpa [#allocation4], 0
    %s11 = scalar_lea.sflag [#allocation4], 1
    %12 = vsyncpa %s11, 0
    loop: start=0, step=1, limit=4
    $region2: #{tpu_custom_call.1} parent=1 // loop_pre_header
      _
    $region3: #{tpu_custom_call.1} parent=1 // loop_header
      %s14 = sphi 0, %s18
      %p15 = scmp.ge.s32.totalorder %s14, 4
      %s21 = sphi 0, %s33
      %s22 = sphi 0, %s29
      %s23 = sphi 0, %s21
      %s24 = sphi 0, %s22
      %s25 = sphi 0, %s23
      %s26 = sphi 0, %s24
      %s38 = sphi 0, %s40
      %s41 = sphi 0, %s38
      %s42 = sphi 0, %s41
      %s58 = sphi 0, %s42
      %s66 = sphi 0, %s68
      %s69 = sphi 0, %s66
      %s70 = sphi 0, %s69
      %s86 = sphi 0, %s70
      %s92 = sphi 0, %s94
      %s95 = sphi 0, %s92
      %s96 = sphi 0, %s95
      %s112 = sphi 0, %s96
    $region4: #{tpu_custom_call.1} parent=1 // loop_header_branch
      %17 = sbr.rel (%p15) target = $region8
    $region5: #{tpu_custom_call.1} parent=1 // loop_body
      %s19 = ssub.s32 %s14, 1
      %s20 = ssub.s32 %s14, 2
      %s27 = sadd.s32 1, %s22
      %p28 = scmp.ge.s32.totalorder %s27, 1
      %s29 = scalar_select %p28, 0, %s27
      %s30 = sadd.s32 1, %s21
      %s31 = scalar_select %p28, %s30, %s21
      %p32 = scmp.ge.s32.totalorder %s31, 2
      %s33 = scalar_select %p32, 0, %s31
      %s34 = ssub.s32 %s21, %s33
      %s35 = ssub.s32 %s22, %s29
      %s36 = sor.u32 %s34, %s35
      %p37 = scmp.eq.s32.totalorder %s36, 0
      %s39 = sadd.s32 %s38, 1
      %s40 = scalar_select %p37, %s38, %s39
      %p43 = pneg %p37
      %p44 = scmp.eq.s32.totalorder %s14, 1
      %p45 = por %p43, %p44
      %p46 = scmp.ne.s32.totalorder %s38, %s41
      %p47 = scmp.eq.s32.totalorder %s14, 0
      %p48 = por %p46, %p47
      %p49 = scmp.ne.s32.totalorder %s38, %s41
      %p50 = scmp.eq.s32.totalorder %s19, 1
      %p51 = por %p49, %p50
      %p52 = scmp.ne.s32.totalorder %s41, %s42
      %p53 = scmp.eq.s32.totalorder %s19, 0
      %p54 = por %p52, %p53
      %p55 = scmp.ne.s32.totalorder %s41, %s42
      %p56 = scmp.eq.s32.totalorder %s20, 1
      %p57 = por %p55, %p56
      %p59 = scmp.ne.s32.totalorder %s42, %s58
      %p60 = scmp.eq.s32.totalorder %s20, 0
      %p61 = por %p59, %p60
      %s62 = ssub.s32 %s21, %s33
      %s63 = ssub.s32 %s22, %s29
      %s64 = sor.u32 %s62, %s63
      %p65 = scmp.eq.s32.totalorder %s64, 0
      %s67 = sadd.s32 %s66, 1
      %s68 = scalar_select %p65, %s66, %s67
      %p71 = pneg %p65
      %p72 = scmp.eq.s32.totalorder %s14, 1
      %p73 = por %p71, %p72
      %p74 = scmp.ne.s32.totalorder %s66, %s69
      %p75 = scmp.eq.s32.totalorder %s14, 0
      %p76 = por %p74, %p75
      %p77 = scmp.ne.s32.totalorder %s66, %s69
      %p78 = scmp.eq.s32.totalorder %s19, 1
      %p79 = por %p77, %p78
      %p80 = scmp.ne.s32.totalorder %s69, %s70
      %p81 = scmp.eq.s32.totalorder %s19, 0
      %p82 = por %p80, %p81
      %p83 = scmp.ne.s32.totalorder %s69, %s70
      %p84 = scmp.eq.s32.totalorder %s20, 1
      %p85 = por %p83, %p84
      %p87 = scmp.ne.s32.totalorder %s70, %s86
      %p88 = scmp.eq.s32.totalorder %s20, 0
      %p89 = por %p87, %p88
      %s90 = ssub.s32 %s21, %s33
      %p91 = scmp.eq.s32.totalorder %s90, 0
      %s93 = sadd.s32 %s92, 1
      %s94 = scalar_select %p91, %s92, %s93
      %p97 = pneg %p91
      %p98 = scmp.eq.s32.totalorder %s14, 1
      %p99 = por %p97, %p98
      %p100 = scmp.ne.s32.totalorder %s92, %s95
      %p101 = scmp.eq.s32.totalorder %s14, 0
      %p102 = por %p100, %p101
      %p103 = scmp.ne.s32.totalorder %s92, %s95
      %p104 = scmp.eq.s32.totalorder %s19, 1
      %p105 = por %p103, %p104
      %p106 = scmp.ne.s32.totalorder %s95, %s96
      %p107 = scmp.eq.s32.totalorder %s19, 0
      %p108 = por %p106, %p107
      %p109 = scmp.ne.s32.totalorder %s95, %s96
      %p110 = scmp.eq.s32.totalorder %s20, 1
      %p111 = por %p109, %p110
      %p113 = scmp.ne.s32.totalorder %s96, %s112
      %p114 = scmp.eq.s32.totalorder %s20, 0
      %p115 = por %p113, %p114
      %p116 = scmp.le.s32.totalorder 1, %s14
      %p117 = scmp.lt.s32.totalorder %s14, 3
      %p118 = pnand %p116, %p117
      %p119 = pneg %p118
      // Predicated region
      $region9: #{tpu_custom_call.1} parent=5 // pred_check
        _
      $region10: #{tpu_custom_call.1} parent=5 // pred_check_branch
        %121 = sbr.rel (%p118) target = $region12
      $region11: #{tpu_custom_call.1} parent=5 // pred_region
        %s122 = ssub.s32 %s14, 1
      $region12: #{tpu_custom_call.1} parent=5 // pred_fallthru
        _
      %p123 = scmp.lt.s32.totalorder %s14, 2
      // Predicated region
      $region13: #{tpu_custom_call.1} parent=5 // pred_check
        %p124 = pneg %p123
      $region14: #{tpu_custom_call.1} parent=5 // pred_check_branch
        %126 = sbr.rel (%p124) target = $region16
      $region15: #{tpu_custom_call.1} parent=5 // pred_region
        // Predicated region
        $region17: #{tpu_custom_call.1} parent=15 // pred_check
          %p127 = pneg %p48
        $region18: #{tpu_custom_call.1} parent=15 // pred_check_branch
          %129 = sbr.rel (%p127) target = $region20
        $region19: #{tpu_custom_call.1} parent=15 // pred_region
          %s130 = sand.u32 %s38, 1
          %s131 = scalar_lea.sflag [#allocation3], %s130
          %s132 = sand.u32 %s38, 1
          %s133 = smul.addr %s132, 8
          %s134 = scalar_lea.vmem [#allocation2], %s133
          %s135 = smul.u32 2, %s22
          %s137 = ssub.s32 128, 128
          %138 = vsyncadd %s131, %s137
          %s139 = smul.addr %s21, 2
          %s140 = sadd.s32 %s135, %s139
          %s141 = smul.addr %s140, 64
          %s142 = scalar_lea.hbm %s0, %s141
          %s144 = sshll.u32 %s134, 4
          %s145 = int_to_ptr.vmem [resolvable:$true] %s144
          %147 = dma.hbm_to_vmem [thread:$0]  %s142, 128, %s145, %s131
        $region20: #{tpu_custom_call.1} parent=15 // pred_fallthru
          _
        // Predicated region
        $region21: #{tpu_custom_call.1} parent=15 // pred_check
          %p148 = pneg %p76
        $region22: #{tpu_custom_call.1} parent=15 // pred_check_branch
          %150 = sbr.rel (%p148) target = $region24
        $region23: #{tpu_custom_call.1} parent=15 // pred_region
          %s151 = smul.u32 2, %s22
          %p152 = scmp.lt.s32.totalorder %s21, 1
          %s153 = scalar_select %p152, %s21, 1
          %p154 = scmp.lt.s32.totalorder %s151, 1
          %s155 = scalar_select %p154, %s151, 1
          %s156 = smul.addr %s153, 2
          %s157 = sadd.s32 %s155, %s156
          %s158 = scalar_lea.vmem %s1, %s157
          %s159 = smul.u32 2, %s22
        $region24: #{tpu_custom_call.1} parent=15 // pred_fallthru
          _
      $region16: #{tpu_custom_call.1} parent=5 // pred_fallthru
        _
      %p160 = scmp.le.s32.totalorder 1, %s14
      %p161 = scmp.lt.s32.totalorder %s14, 3
      %p162 = pnand %p160, %p161
      %p163 = pneg %p162
      // Predicated region
      $region25: #{tpu_custom_call.1} parent=5 // pred_check
        _
      $region26: #{tpu_custom_call.1} parent=5 // pred_check_branch
        %165 = sbr.rel (%p162) target = $region28
      $region27: #{tpu_custom_call.1} parent=5 // pred_region
        %s166 = ssub.s32 %s14, 1
        %s167 = sand.u32 %s41, 1
        %s168 = scalar_lea.sflag [#allocation3], %s167
        %s169 = sand.u32 %s41, 1
        %s170 = smul.addr %s169, 8
        %s171 = scalar_lea.vmem [#allocation2], %s170
        // Predicated region
        $region29: #{tpu_custom_call.1} parent=27 // pred_check
          %p172 = pneg %p54
        $region30: #{tpu_custom_call.1} parent=27 // pred_check_branch
          %174 = sbr.rel (%p172) target = $region32
        $region31: #{tpu_custom_call.1} parent=27 // pred_region
          %175 = dma.done %s168, 128
        $region32: #{tpu_custom_call.1} parent=27 // pred_fallthru
          _
        %s176 = sand.u32 %s41, 1
        %s177 = scalar_lea.sflag [#allocation3], %s176
        %s178 = sand.u32 %s41, 1
        %s179 = smul.addr %s178, 8
        %s180 = scalar_lea.vmem [#allocation2], %s179
        %p181 = pneg %p54
        %p182 = pneg %p51
        %s183 = smul.u32 2, %s24
        %p184 = scmp.lt.s32.totalorder %s23, 1
        %s185 = scalar_select %p184, %s23, 1
        %p186 = scmp.lt.s32.totalorder %s183, 1
        %s187 = scalar_select %p186, %s183, 1
        %s188 = smul.addr %s185, 2
        %s189 = sadd.s32 %s187, %s188
        %s190 = scalar_lea.vmem %s1, %s189
        %p191 = pneg %p82
        %p192 = pneg %p79
        %p193 = pneg %p108
        %p194 = pneg %p105
        %s195 = sand.u32 %s95, 1
        %s196 = scalar_lea.sflag [#allocation4], %s195
        %s197 = sand.u32 %s95, 1
        %s198 = scalar_lea.vmem [#allocation5], %s197
        %s199 = smul.u32 2, %s24
        %s200 = smul.u32 2, %s24
        %p201 = scmp.lt.s32.totalorder %s23, 1
        %s202 = scalar_select %p201, %s23, 1
        %p203 = scmp.lt.s32.totalorder %s200, 1
        %s204 = scalar_select %p203, %s200, 1
        %s205 = smul.addr %s202, 2
        %s206 = sadd.s32 %s204, %s205
        %s207 = scalar_lea.vmem %s1, %s206
        %s208 = smul.u32 2, %s24
        %p209 = scmp.eq.s32.totalorder %s24, 0
        // Predicated region
        $region33: #{tpu_custom_call.1} parent=27 // pred_check
          %p210 = pneg %p209
        $region34: #{tpu_custom_call.1} parent=27 // pred_check_branch
          %212 = sbr.rel (%p210) target = $region36
        $region35: #{tpu_custom_call.1} parent=27 // pred_region
          %213 = vst [vmem:[%s198] sm:$0x1] 0.0
        $region36: #{tpu_custom_call.1} parent=27 // pred_fallthru
          _
        %v214 = vld [vmem:[%s171] sm:$0xff]
        %v215 = vld [vmem:[%s207] sm:$0x3]
        %v216 = vunpack.c.0.s8 %v215
        %v217 = vcvt.s32.f32 %v216
        %v219 = vcombine.high %v214, %v214
        %vm221 = vcmask 1043456
        %v222 = vsel %vm221, %v214, -inf
        %v223 = vrot.slane %v222, 4
        %v224 = vmax.f32 %v222, %v223
        %v225 = vrot.slane %v224, 2
        %v226 = vmax.f32 %v224, %v225
        %v227 = vrot.slane %v226, 1
        %v228 = vmax.f32 %v226, %v227
        %v229 = vsel %vm221, %v219, -inf
        %v230 = vrot.slane %v229, 4
        %v231 = vmax.f32 %v229, %v230
        %v232 = vrot.slane %v231, 2
        %v233 = vmax.f32 %v231, %v232
        %v234 = vrot.slane %v233, 1
        %v235 = vmax.f32 %v233, %v234
        %v238 = vcombine.low %v228, %v235
        %v240 = vsub.f32 %v214, %v238
        %v241 = vmul.f32 %v240, 1.442695
        %v242 = vpow.pop %v241
        %v244 = vcombine.high %v242, %v242
        %v246 = vsel %vm221, %v242, 0.0
        %v247 = vrot.slane %v246, 4
        %v248 = vadd.f32 %v246, %v247
        %v249 = vrot.slane %v248, 2
        %v250 = vadd.f32 %v248, %v249
        %v251 = vrot.slane %v250, 1
        %v252 = vadd.f32 %v250, %v251
        %v253 = vsel %vm221, %v244, 0.0
        %v254 = vrot.slane %v253, 4
        %v255 = vadd.f32 %v253, %v254
        %v256 = vrot.slane %v255, 2
        %v257 = vadd.f32 %v255, %v256
        %v258 = vrot.slane %v257, 1
        %v259 = vadd.f32 %v257, %v258
        %v260 = vrcp.pop %v252
        %v261 = vrcp.pop %v259
        %v264 = vcombine.low %v260, %v261
        %v265 = vrot.slane %v264, 7
        %v267 = vmul.f32 %v242, %v265
        %v268 = vlaneseq
        %v269 = vand.u32 %v268, 127
        %v270 = vadd.s32 %v269, 128
        %s271 = smul.u32 %s24, 256
        %v272 = vstv %s271
        %v273 = vadd.s32 %v272, %v269
        %v274 = vadd.s32 %v272, %v270
        %vm275 = vcmp.lt.s32.totalorder %v273, 256
        %vm276 = vcmp.lt.s32.totalorder %v274, 256
        %v278 = vlaneseq
        %v279 = vshrl.u32 %v278, 7
        %v280 = vsub.s32 1, %v279
        %v281 = vrot.slane %v267, %v280
        %v282 = vlaneseq
        %v283 = vshrl.u32 %v282, 7
        %v284 = vsub.s32 5, %v283
        %v285 = vrot.slane %v267, %v284
        %v288 = vsel %vm275, %v281, 0.0
        %v289 = vsel %vm276, %v285, 0.0
        %v291 = vlaneseq
        %v292 = vshrl.u32 %v291, 7
        %v293 = vsub.s32 0, %v292
        %v294 = vrot.slane %v217, %v293
        %v295 = vlaneseq
        %v296 = vshrl.u32 %v295, 7
        %v297 = vsub.s32 4, %v296
        %v298 = vrot.slane %v217, %v297
        %v301 = vsel %vm275, %v294, 0.0
        %v302 = vsel %vm276, %v298, 0.0
        %v303 = vmul.f32 %v288, %v301
        %v304 = vmul.f32 %v289, %v302
        %vm305 = vcmask 1040384
        %v306 = vsel %vm305, %v303, 0.0
        %v307 = vsel %vm305, %v304, 0.0
        %v308 = vadd.f32 %v306, %v307
        %309 = vadd.xlane.f32.xlu0 %v308
        %v310 = vpop.xlane.xlu0 %309
        %v311 = vrot.slane %v310, 4
        %v312 = vadd.f32 %v310, %v311
        %v313 = vrot.slane %v312, 2
        %v314 = vadd.f32 %v312, %v313
        %v315 = vrot.slane %v314, 1
        %v316 = vadd.f32 %v314, %v315
        %s317 = vtos %v316
        %v318 = vsel %vm305, %v288, 0.0
        %v319 = vsel %vm305, %v289, 0.0
        %v320 = vadd.f32 %v318, %v319
        %321 = vadd.xlane.f32.xlu0 %v320
        %v322 = vpop.xlane.xlu0 %321
        %v323 = vrot.slane %v322, 4
        %v324 = vadd.f32 %v322, %v323
        %v325 = vrot.slane %v324, 2
        %v326 = vadd.f32 %v324, %v325
        %v327 = vrot.slane %v326, 1
        %v328 = vadd.f32 %v326, %v327
        %s329 = vtos %v328
        %v330 = vsel %vm305, %v301, 0.0
        %v331 = vsel %vm305, %v302, 0.0
        %v332 = vadd.f32 %v330, %v331
        %333 = vadd.xlane.f32.xlu0 %v332
        %v334 = vpop.xlane.xlu0 %333
        %v335 = vrot.slane %v334, 4
        %v336 = vadd.f32 %v334, %v335
        %v337 = vrot.slane %v336, 2
        %v338 = vadd.f32 %v336, %v337
        %v339 = vrot.slane %v338, 1
        %v340 = vadd.f32 %v338, %v339
        %s341 = vtos %v340
        %v342 = vld [vmem:[%s198] sm:$0x1]
        %vm343 = vcmp.eq.s32.totalorder %v269, 0
        %v344 = vstv %s317
        %v345 = vsel %vm343, %v344, 0.0
        %vm346 = vcmp.eq.s32.totalorder %v269, 1
        %v347 = vstv %s329
        %v348 = vsel %vm346, %v347, 0.0
        %v349 = vadd.f32 %v345, %v348
        %vm350 = vcmp.eq.s32.totalorder %v269, 2
        %v351 = vstv %s341
        %v352 = vsel %vm350, %v351, 0.0
        %v353 = vadd.f32 %v349, %v352
        %v354 = vadd.f32 %v342, %v353
        %355 = vst [vmem:[%s198] sm:$0x1] %v354
        %s356 = sand.u32 %s95, 1
        %s357 = scalar_lea.sflag [#allocation4], %s356
        %s358 = sand.u32 %s95, 1
        %s359 = scalar_lea.vmem [#allocation5], %s358
        // Predicated region
        $region37: #{tpu_custom_call.1} parent=27 // pred_check
          %p360 = pneg %p105
        $region38: #{tpu_custom_call.1} parent=27 // pred_check_branch
          %362 = sbr.rel (%p360) target = $region40
        $region39: #{tpu_custom_call.1} parent=27 // pred_region
          %s364 = ssub.s32 16, 16
          %365 = vsyncadd %s357, %s364
          %s366 = smul.addr %s23, 16
          %s367 = scalar_lea.hbm %s2, %s366
          %s369 = sshll.u32 %s359, 4
          %s370 = int_to_ptr.vmem [resolvable:$true] %s369
          %372 = dma.vmem_to_hbm [thread:$0]  %s370, 16, %s367, %s357
        $region40: #{tpu_custom_call.1} parent=27 // pred_fallthru
          _
      $region28: #{tpu_custom_call.1} parent=5 // pred_fallthru
        _
      %p373 = scmp.le.s32.totalorder 2, %s14
      // Predicated region
      $region41: #{tpu_custom_call.1} parent=5 // pred_check
        %p374 = pneg %p373
      $region42: #{tpu_custom_call.1} parent=5 // pred_check_branch
        %376 = sbr.rel (%p374) target = $region44
      $region43: #{tpu_custom_call.1} parent=5 // pred_region
        %s377 = ssub.s32 %s14, 2
        // Predicated region
        $region45: #{tpu_custom_call.1} parent=43 // pred_check
          %p378 = pneg %p111
        $region46: #{tpu_custom_call.1} parent=43 // pred_check_branch
          %380 = sbr.rel (%p378) target = $region48
        $region47: #{tpu_custom_call.1} parent=43 // pred_region
          %s381 = sand.u32 %s96, 1
          %s382 = scalar_lea.sflag [#allocation4], %s381
          %s383 = sand.u32 %s96, 1
          %s384 = scalar_lea.vmem [#allocation5], %s383
          %385 = dma.done %s382, 16
        $region48: #{tpu_custom_call.1} parent=43 // pred_fallthru
          _
      $region44: #{tpu_custom_call.1} parent=5 // pred_fallthru
        _
    $region6: #{tpu_custom_call.1} parent=1 // loop_footer
      %s18 = sadd.s32 1, %s14
    $region7: #{tpu_custom_call.1} parent=1 // loop_footer_branch
      %13 = sbr.rel target = $region3
    $region8: #{tpu_custom_call.1} parent=1 // loop_exit
      _
    %386 = vsyncpa [#allocation3], 1
    %s387 = scalar_lea.sflag [#allocation3], 1
    %388 = vsyncpa %s387, 1
    %389 = vsyncpa [#allocation4], 1
    %s390 = scalar_lea.sflag [#allocation4], 1
    %391 = vsyncpa %s390, 1

</llo_original>
